<compile_context>
chip_gen: v6e
topology: v6e:2x2x1
jax: 0.10.0
libtpu: 0.0.40
codegen_flags: <defaults>
</compile_context>

<pallas_src>
import jax
import jax.numpy as jnp
from jax.experimental import pallas as pl
from jax.experimental.pallas import tpu as pltpu

_MiB = 1024 * 1024


def _conv1x1_bn_relu_kernel(x_ref, w_ref, shift_ref, o_ref):
    # x_ref:     (Bt, Cin, T)   spatial tile of Bt batch elements (NCHW-native)
    # w_ref:     (Cout, Cin)    BN-scale-folded 1x1 conv weight (grid-resident)
    # shift_ref: (Cout, 1)      folded BN shift = beta - mean * scale  (f32)
    # o_ref:     (Bt, Cout, T)  lane-dense output tile
    for b in range(x_ref.shape[0]):          # Bt is small & static -> unrolled
        y = jnp.dot(w_ref[...], x_ref[b],
                    preferred_element_type=jnp.float32)   # MXU, f32 accumulate
        y = y + shift_ref[...]                            # fused BN shift (f32)
        o_ref[b] = jnp.maximum(y, 0.0).astype(o_ref.dtype)  # fused ReLU + cast


def _vmem_budget_and_cap():
    """Generation-aware (budget, hard-cap) for VMEM planning."""
    try:
        cap_bytes = int(pltpu.get_tpu_info().vmem_capacity_bytes)
    except Exception:  # pragma: no cover - conservative fallback
        cap_bytes = 64 * _MiB
    if cap_bytes >= 96 * _MiB:            # v5e / v6e: 128 MiB per TensorCore
        return 90 * _MiB, 100 * _MiB
    return 40 * _MiB, 46 * _MiB           # v7x: 64 MiB per TensorCore


def _footprint(bt, t, cin, cout, x_item, out_item):
    """Per-step VMEM bytes: buffers + f32 MXU result + epilogue temporaries."""
    return (2 * bt * cin * t * x_item        # double-buffered x blocks
            + 2 * bt * cout * t * out_item   # double-buffered out blocks
            + 2 * cout * cin * x_item        # resident weight (buffered)
            + 2 * cout * 4                   # resident shift
            + 2 * cout * t * 4)              # f32 MXU result + epilogue temp


def _select_tiling(n, hw, cin, cout, x_item, out_item, budget):
    """Pick (batch_tile, spatial_tile) for near-roofline HBM streaming."""
    if hw <= 256:
        tile = hw                      # full-dim block (allowed by layout rules)
    else:
        tile = 128
        for cand in (8192, 4096, 2048, 1024, 512, 256, 128):
            if cand > hw:
                continue
            if _footprint(1, cand, cin, cout, x_item, out_item) <= budget:
                tile = cand
                break
    # Small-workload amortization: if one tile already covers the image and the
    # per-step traffic is tiny, batch images per step (~0.35 us fixed overhead).
    bt = 1
    if tile >= hw:
        target = 2 * _MiB
        while (bt < n
               and bt * cin * tile * x_item < target
               and _footprint(2 * bt, tile, cin, cout, x_item, out_item) <= budget):
            bt *= 2
        bt = min(bt, n)
    # v7x has 2 TensorCores: avoid collapsing a sizable image to a single step.
    if n == 1 and bt == 1 and pl.cdiv(hw, tile) == 1 and hw >= 512:
        tile = max(128, pl.cdiv(hw, 2 * 128) * 128)
    return bt, tile


def custom_conv_module_forward(x_nchw, weight, gamma, beta,
                               running_mean, running_var, eps=1e-5,
                               out_dtype=None, tile_hw=None, batch_tile=None,
                               x_buffering=None):
    """x_nchw: (N, Cin, H, W); weight: (Cout, Cin, 1, 1)  [PyTorch layout].

    Compute dtype follows x's dtype (no wrapper-side HBM convert). Pass
    out_dtype=jnp.bfloat16 to halve writeback when the consumer accepts it.
    x_buffering=3 requests triple-buffering of the x stream (v7x sweep knob).
    """
    N, Cin, H, W = x_nchw.shape
    Cout = weight.shape[0]
    HW = H * W
    if out_dtype is None:
        out_dtype = x_nchw.dtype

    # --- glue (plain JAX): BN folding; weight is tiny so the cast is free ----
    scale = (gamma / jnp.sqrt(running_var + eps)).astype(jnp.float32)
    w_scaled = (weight.reshape(Cout, Cin).astype(jnp.float32)
                * scale[:, None]).astype(x_nchw.dtype)
    shift = (beta - running_mean * scale).reshape(Cout, 1).astype(jnp.float32)
    x = x_nchw.reshape(N, Cin, HW)           # free reshape, stays NCHW-native

    x_item = jnp.dtype(x.dtype).itemsize
    out_item = jnp.dtype(out_dtype).itemsize
    budget, cap = _vmem_budget_and_cap()

    auto_bt, auto_tile = _select_tiling(N, HW, Cin, Cout, x_item, out_item,
                                        budget)
    bt = batch_tile if batch_tile is not None else auto_bt
    t = tile_hw if tile_hw is not None else auto_tile
    bt = max(1, min(int(bt), N))
    t = max(1, min(int(t), HW))

    grid = (pl.cdiv(N, bt), pl.cdiv(HW, t))   # ragged tails -> OOB-masked blocks
    footprint = _footprint(bt, t, Cin, Cout, x_item, out_item)
    vmem_limit = int(min(cap, max(16 * _MiB, footprint + 8 * _MiB)))

    x_spec_kwargs = {}
    if x_buffering is not None and x_buffering > 2:
        # v7x: deeper pipelining on the dominant stream if VMEM headroom allows.
        extra = (x_buffering - 2) * bt * Cin * t * x_item
        if footprint + extra <= budget:
            x_spec_kwargs = dict(pipeline_mode=pl.Buffered(int(x_buffering)))
            vmem_limit = int(min(cap, vmem_limit + extra))

    cost = pl.CostEstimate(
        flops=2 * N * HW * Cin * Cout,
        transcendentals=0,
        bytes_accessed=(x.size * x_item + w_scaled.size * x_item
                        + shift.size * 4 + N * Cout * HW * out_item))

    out = pl.pallas_call(
        _conv1x1_bn_relu_kernel,
        out_shape=jax.ShapeDtypeStruct((N, Cout, HW), out_dtype),
        grid_spec=pltpu.PrefetchScalarGridSpec(
            num_scalar_prefetch=0,
            grid=grid,
            in_specs=[
                pl.BlockSpec((bt, Cin, t), lambda n, s: (n, 0, s),
                             **x_spec_kwargs),                      # x
                pl.BlockSpec((Cout, Cin), lambda n, s: (0, 0)),     # weight
                pl.BlockSpec((Cout, 1), lambda n, s: (0, 0)),       # shift
            ],
            out_specs=pl.BlockSpec((bt, Cout, t), lambda n, s: (n, 0, s)),
        ),
        compiler_params=pltpu.CompilerParams(
            dimension_semantics=("parallel", "parallel"),
            vmem_limit_bytes=vmem_limit),
        cost_estimate=cost,
    )(x, w_scaled, shift)

    return out.reshape(N, Cout, H, W)   # free reshape, already NCHW


def _reference(x_nchw, weight, gamma, beta, running_mean, running_var,
               eps=1e-5):
    # pure-JAX reference (f32) for correctness checks
    Cout, Cin = weight.shape[0], weight.shape[1]
    y = jnp.einsum('nchw,oc->nohw', x_nchw.astype(jnp.float32),
                   weight.reshape(Cout, Cin).astype(jnp.float32))
    y = (y - running_mean[None, :, None, None]) / jnp.sqrt(
        running_var[None, :, None, None] + eps)
    y = y * gamma[None, :, None, None] + beta[None, :, None, None]
    return jnp.maximum(y, 0.0)


if __name__ == "__main__":
    key = jax.random.PRNGKey(0)
    k_x, k_w, k_g, k_b, k_m, k_v, k_x2 = jax.random.split(key, 7)

    N, Cin, H, W = 2, 4, 16, 16
    Cout = 8

    x = jax.random.normal(k_x, (N, Cin, H, W), dtype=jnp.float32)
    # Conv2d weight (Cout, Cin, 1, 1), bias=False
    weight = jax.random.normal(k_w, (Cout, Cin, 1, 1), dtype=jnp.float32) * 0.1
    # BatchNorm2d parameters / running stats (deterministic, inference-mode)
    gamma = 1.0 + 0.1 * jax.random.normal(k_g, (Cout,), dtype=jnp.float32)
    beta = 0.1 * jax.random.normal(k_b, (Cout,), dtype=jnp.float32)
    running_mean = 0.05 * jax.random.normal(k_m, (Cout,), dtype=jnp.float32)
    running_var = jnp.abs(1.0 + 0.1 * jax.random.normal(
        k_v, (Cout,), dtype=jnp.float32))

    ref = _reference(x, weight, gamma, beta, running_mean, running_var)

    # f32 path (HW = 256; batch blocking coalesces both images into one step)
    out = custom_conv_module_forward(x, weight, gamma, beta,
                                     running_mean, running_var)
    out = jax.block_until_ready(out)
    assert out.shape == (N, Cout, H, W)
    assert jnp.max(jnp.abs(out - ref)) < 1e-4

    # bf16 path: bf16 x comes from the producer (no wrapper convert) and output
    # is written back as bf16 (halved HBM writeback). Looser tolerance.
    out_bf16 = custom_conv_module_forward(x.astype(jnp.bfloat16), weight,
                                          gamma, beta, running_mean,
                                          running_var,
                                          out_dtype=jnp.bfloat16)
    out_bf16 = jax.block_until_ready(out_bf16)
    assert out_bf16.dtype == jnp.bfloat16
    assert jnp.max(jnp.abs(out_bf16.astype(jnp.float32) - ref)) < 5e-2

    # ragged spatial tail: HW = 400 not divisible by the forced 256 tile
    # (exercises the pl.cdiv grid + OOB-masked last block)
    H2 = W2 = 20
    x2 = jax.random.normal(k_x2, (N, Cin, H2, W2), dtype=jnp.float32)
    out2 = custom_conv_module_forward(x2, weight, gamma, beta,
                                      running_mean, running_var, tile_hw=256)
    out2 = jax.block_until_ready(out2)
    ref2 = _reference(x2, weight, gamma, beta, running_mean, running_var)
    assert out2.shape == (N, Cout, H2, W2)
    assert jnp.max(jnp.abs(out2 - ref2)) < 1e-4

    print("KERNEL_OK")
</pallas_src>

<mosaic_0001>
module attributes {stable_mosaic.version = 11 : i64} {
  func.func @_conv1x1_bn_relu_kernel(%arg0: i32, %arg1: i32, %arg2: memref<2x4x256xf32, #tpu.memory_space<vmem>>, %arg3: memref<8x4xf32, #tpu.memory_space<vmem>>, %arg4: memref<8x1xf32, #tpu.memory_space<vmem>>, %arg5: memref<2x8x256xf32, #tpu.memory_space<vmem>>) attributes {dimension_semantics = [#tpu.dimension_semantics<parallel>, #tpu.dimension_semantics<parallel>], iteration_bounds = array<i64: 1, 1>, scalar_prefetch = 0 : i64, scratch_operands = 0 : i64, tpu.core_type = #tpu.core_type<tc>, window_params = [{transform_indices = @transform_0, window_bounds = array<i64: 2, 4, 256>}, {pipeline_mode = #tpu.pipeline_mode<synchronous>, transform_indices = @transform_1, window_bounds = array<i64: 8, 4>}, {pipeline_mode = #tpu.pipeline_mode<synchronous>, transform_indices = @transform_2, window_bounds = array<i64: 8, 1>}, {transform_indices = @transform_3, window_bounds = array<i64: 2, 8, 256>}]} {
    %c0 = arith.constant 0 : index
    %c0_0 = arith.constant 0 : index
    %0 = vector.load %arg3[%c0, %c0_0] : memref<8x4xf32, #tpu.memory_space<vmem>>, vector<8x4xf32>
    %c0_1 = arith.constant 0 : index
    %c0_2 = arith.constant 0 : index
    %c0_3 = arith.constant 0 : index
    %1 = vector.load %arg2[%c0_1, %c0_2, %c0_3] : memref<2x4x256xf32, #tpu.memory_space<vmem>>, vector<1x4x256xf32>
    %2 = vector.shape_cast %1 : vector<1x4x256xf32> to vector<4x256xf32>
    %cst = arith.constant dense<0.000000e+00> : vector<8x256xf32>
    %3 = tpu.matmul %0, %2, %cst {dimension_numbers = #tpu.dot_dimension_numbers<[1], [0], [0], [1], [0, 0, 1, 1], [], []>} : vector<8x4xf32>, vector<4x256xf32>, vector<8x256xf32> -> vector<8x256xf32>
    %c0_4 = arith.constant 0 : index
    %c0_5 = arith.constant 0 : index
    %4 = vector.load %arg4[%c0_4, %c0_5] : memref<8x1xf32, #tpu.memory_space<vmem>>, vector<8x1xf32>
    %5 = vector.broadcast %4 : vector<8x1xf32> to vector<8x256xf32>
    %6 = arith.addf %3, %5 : vector<8x256xf32>
    %cst_6 = arith.constant 0.000000e+00 : f32
    %7 = vector.broadcast %cst_6 : f32 to vector<8x256xf32>
    %8 = arith.maximumf %6, %7 : vector<8x256xf32>
    %c0_7 = arith.constant 0 : index
    %c0_8 = arith.constant 0 : index
    %c0_9 = arith.constant 0 : index
    %9 = vector.load %arg5[%c0_7, %c0_8, %c0_9] : memref<2x8x256xf32, #tpu.memory_space<vmem>>, vector<1x8x256xf32>
    %10 = vector.shape_cast %9 : vector<1x8x256xf32> to vector<8x256xf32>
    %11 = vector.shape_cast %8 : vector<8x256xf32> to vector<1x8x256xf32>
    tpu.vector_store %arg5[%c0_7, %c0_8, %c0_9], %11 {strides = array<i32>} : memref<2x8x256xf32, #tpu.memory_space<vmem>>, vector<1x8x256xf32>,
    %c0_10 = arith.constant 0 : index
    %c0_11 = arith.constant 0 : index
    %12 = vector.load %arg3[%c0_10, %c0_11] : memref<8x4xf32, #tpu.memory_space<vmem>>, vector<8x4xf32>
    %c1 = arith.constant 1 : index
    %c0_12 = arith.constant 0 : index
    %c0_13 = arith.constant 0 : index
    %13 = vector.load %arg2[%c1, %c0_12, %c0_13] : memref<2x4x256xf32, #tpu.memory_space<vmem>>, vector<1x4x256xf32>
    %14 = vector.shape_cast %13 : vector<1x4x256xf32> to vector<4x256xf32>
    %cst_14 = arith.constant dense<0.000000e+00> : vector<8x256xf32>
    %15 = tpu.matmul %12, %14, %cst_14 {dimension_numbers = #tpu.dot_dimension_numbers<[1], [0], [0], [1], [0, 0, 1, 1], [], []>} : vector<8x4xf32>, vector<4x256xf32>, vector<8x256xf32> -> vector<8x256xf32>
    %c0_15 = arith.constant 0 : index
    %c0_16 = arith.constant 0 : index
    %16 = vector.load %arg4[%c0_15, %c0_16] : memref<8x1xf32, #tpu.memory_space<vmem>>, vector<8x1xf32>
    %17 = vector.broadcast %16 : vector<8x1xf32> to vector<8x256xf32>
    %18 = arith.addf %15, %17 : vector<8x256xf32>
    %cst_17 = arith.constant 0.000000e+00 : f32
    %19 = vector.broadcast %cst_17 : f32 to vector<8x256xf32>
    %20 = arith.maximumf %18, %19 : vector<8x256xf32>
    %c1_18 = arith.constant 1 : index
    %c0_19 = arith.constant 0 : index
    %c0_20 = arith.constant 0 : index
    %21 = vector.load %arg5[%c1_18, %c0_19, %c0_20] : memref<2x8x256xf32, #tpu.memory_space<vmem>>, vector<1x8x256xf32>
    %22 = vector.shape_cast %21 : vector<1x8x256xf32> to vector<8x256xf32>
    %23 = vector.shape_cast %20 : vector<8x256xf32> to vector<1x8x256xf32>
    tpu.vector_store %arg5[%c1_18, %c0_19, %c0_20], %23 {strides = array<i32>} : memref<2x8x256xf32, #tpu.memory_space<vmem>>, vector<1x8x256xf32>,
    return
  }
  func.func @transform_0(%arg0: i32, %arg1: i32) -> (i32, i32, i32) {
    %c0_i32 = arith.constant 0 : i32
    %c0_i32_0 = arith.constant 0 : i32
    return %arg0, %c0_i32, %arg1 : i32, i32, i32
  }
  func.func @transform_1(%arg0: i32, %arg1: i32) -> (i32, i32) {
    %c0_i32 = arith.constant 0 : i32
    %c0_i32_0 = arith.constant 0 : i32
    %c0_i32_1 = arith.constant 0 : i32
    return %c0_i32, %c0_i32_0 : i32, i32
  }
  func.func @transform_2(%arg0: i32, %arg1: i32) -> (i32, i32) {
    %c0_i32 = arith.constant 0 : i32
    %c0_i32_0 = arith.constant 0 : i32
    %c0_i32_1 = arith.constant 0 : i32
    return %c0_i32, %c0_i32_0 : i32, i32
  }
  func.func @transform_3(%arg0: i32, %arg1: i32) -> (i32, i32, i32) {
    %c0_i32 = arith.constant 0 : i32
    %c0_i32_0 = arith.constant 0 : i32
    return %arg0, %c0_i32, %arg1 : i32, i32, i32
  }
}

</mosaic_0001>

<llo_original>
// kernel: tpu_custom_call.1
$region0: #{tpu_custom_call.1}
  #allocation0 [shape = 'u32[]', space=smem, size = 0x4, offset = 0x4, fixed_abs, tag = 'smem constant byte address 0x4 - core index']
  #allocation1 [shape = 'u32[144,128]{1,0:T(1,128)}', space=vmem, size = 0x12000, scoped, tag = 'internal scratch']
  %s0 = inlined_call_operand.vmem [shape: f32[2,4,256], index: 0, kind: input, shape index: {}]
  %s1 = inlined_call_operand.vmem [shape: f32[8,4], index: 1, kind: input, shape index: {}]
  %s2 = inlined_call_operand.vmem [shape: f32[8,1], index: 2, kind: input, shape index: {}]
  %s3 = inlined_call_operand.hbm [shape: f32[2,8,256], index: 3, kind: output, shape index: {}]
  %s4 = sld [smem:[#allocation0]]
  $region22: #{tpu_custom_call.1} parent=0
    _
  %s6 = ssub.s32 1, %s4
  %s7 = scalar_select 0, %s6, %s4
  $region1: #{tpu_custom_call.1} parent=0
    #allocation2 [shape = 'u8[16384]{0}', space=vmem, size = 0x4000, scoped, tag = 'output window, operand 0, single buffered']
    #allocation3 [shape = 's32[1]{0}', space=sflag, size = 0x4, scoped, tag = 'scoped memory for tpu_custom_call.1']
    %8 = vsyncpa [#allocation3], 0
    // Predicated region
    $region2: #{tpu_custom_call.1} parent=1 // pred_check
      _
    $region3: #{tpu_custom_call.1} parent=1 // pred_check_branch
      %10 = sbr.rel (0) target = $region5
    $region4: #{tpu_custom_call.1} parent=1 // pred_region
      _
    $region5: #{tpu_custom_call.1} parent=1 // pred_fallthru
      _
    // Predicated region
    $region6: #{tpu_custom_call.1} parent=1 // pred_check
      _
    $region7: #{tpu_custom_call.1} parent=1 // pred_check_branch
      %12 = sbr.rel (0) target = $region9
    $region8: #{tpu_custom_call.1} parent=1 // pred_region
      _
    $region9: #{tpu_custom_call.1} parent=1 // pred_fallthru
      _
    // Predicated region
    $region10: #{tpu_custom_call.1} parent=1 // pred_check
      _
    $region11: #{tpu_custom_call.1} parent=1 // pred_check_branch
      %14 = sbr.rel (0) target = $region13
    $region12: #{tpu_custom_call.1} parent=1 // pred_region
      _
    $region13: #{tpu_custom_call.1} parent=1 // pred_fallthru
      _
    %v15 = vld [vmem:[%s1] sm:$0xff]
    %v16 = vld [vmem:[%s0] sm:$0xff]
    %v17 = vld [vmem:[%s2] sm:$0xff]
    %19 = vset.pattern.permute.xlu0 0
    %20 = vperm.xlu0 %19, %v17
    %v21 = vpop.permute.xlu0 %20
    %v24 = vcombine.high %v16, %v16
    %vm25 = vcmask 31744
    %v27 = vsel %vm25, %v15, 0
    %vm29 = vcmask 1043456
    %v30 = vsel %vm29, %v16, 0
    %v32 = vsel %vm29, %v24, 0
    %34 = vmatprep.subr.mxu0 0.0
    %35 = vmatpush1.msra.mxu0 0.0
    %36 = vmatprep.subr.mxu0 0.0
    %37 = vmatpush1.msra.mxu0 0.0
    %38 = vmatprep.subr.mxu0 0.0
    %39 = vmatpush1.msra.mxu0 0.0
    %40 = vmatprep.subr.mxu0 0.0
    %41 = vmatpush1.msra.mxu0 0.0
    %42 = vmatprep.subr.mxu0 0.0
    %43 = vmatpush1.msra.mxu0 0.0
    %44 = vmatprep.subr.mxu0 0.0
    %45 = vmatpush1.msra.mxu0 0.0
    %46 = vmatprep.subr.mxu0 0.0
    %47 = vmatpush1.msra.mxu0 0.0
    %48 = vmatprep.subr.mxu0 0.0
    %49 = vmatpush1.msra.mxu0 0.0
    %50 = vmatprep.subr.mxu0 0.0
    %51 = vmatpush1.msra.mxu0 0.0
    %52 = vmatprep.subr.mxu0 0.0
    %53 = vmatpush1.msra.mxu0 0.0
    %54 = vmatprep.subr.mxu0 0.0
    %55 = vmatpush1.msra.mxu0 0.0
    %56 = vmatprep.subr.mxu0 0.0
    %57 = vmatpush1.msra.mxu0 0.0
    %58 = vmatprep.subr.mxu0 0.0
    %59 = vmatpush1.msra.mxu0 0.0
    %60 = vmatprep.subr.mxu0 0.0
    %61 = vmatpush1.msra.mxu0 0.0
    %62 = vmatprep.subr.mxu0 0.0
    %63 = vmatpush1.msra.mxu0 0.0
    %64 = vmatprep.subr.mxu0 %v32
    %65 = vmatpush1.msra.mxu0 %v30
    %66 = vmatprep.subr.mxu0 0.0
    %67 = vmatpush2.msra.mxu0 0.0
    %68 = vmatprep.subr.mxu0 0.0
    %69 = vmatpush2.msra.mxu0 0.0
    %70 = vmatprep.subr.mxu0 0.0
    %71 = vmatpush2.msra.mxu0 0.0
    %72 = vmatprep.subr.mxu0 0.0
    %73 = vmatpush2.msra.mxu0 0.0
    %74 = vmatprep.subr.mxu0 0.0
    %75 = vmatpush2.msra.mxu0 0.0
    %76 = vmatprep.subr.mxu0 0.0
    %77 = vmatpush2.msra.mxu0 0.0
    %78 = vmatprep.subr.mxu0 0.0
    %79 = vmatpush2.msra.mxu0 0.0
    %80 = vmatprep.subr.mxu0 0.0
    %81 = vmatpush2.msra.mxu0 0.0
    %82 = vmatprep.subr.mxu0 0.0
    %83 = vmatpush2.msra.mxu0 0.0
    %84 = vmatprep.subr.mxu0 0.0
    %85 = vmatpush2.msra.mxu0 0.0
    %86 = vmatprep.subr.mxu0 0.0
    %87 = vmatpush2.msra.mxu0 0.0
    %88 = vmatprep.subr.mxu0 0.0
    %89 = vmatpush2.msra.mxu0 0.0
    %90 = vmatprep.subr.mxu0 0.0
    %91 = vmatpush2.msra.mxu0 0.0
    %92 = vmatprep.subr.mxu0 0.0
    %93 = vmatpush2.msra.mxu0 0.0
    %94 = vmatprep.subr.mxu0 0.0
    %95 = vmatpush2.msra.mxu0 0.0
    %96 = vmatprep.subr.mxu0 0.0
    %97 = vmatpush2.msra.mxu0 0.0
    %98 = vmatprep.mubr.f32.mxu0 0.0
    %99 = vmatmul.mubr.f32.gmra.mxu0 %v27
    %v100 = vpop.f32.mrf.mxu0
    %v101 = vadd.f32 %v21, %v100
    %v102 = vpop.f32.mrf.mxu0
    %v103 = vadd.f32 %v21, %v102
    %104 = vdwg.mxu0
    %v105 = vmax.f32 %v101, 0.0
    %v106 = vmax.f32 %v103, 0.0
    %107 = vst [vmem:[#allocation2] sm:$0xff] %v105
    %108 = vst [vmem:[#allocation2 + $0x8] sm:$0xff] %v106
    %v109 = vld [vmem:[%s1] sm:$0xff]
    %s110 = scalar_lea.vmem %s0, 8
    %v111 = vld [vmem:[%s110] sm:$0xff]
    %v112 = vld [vmem:[%s2] sm:$0xff]
    %114 = vset.pattern.permute.xlu0 0
    %115 = vperm.xlu0 %114, %v112
    %v116 = vpop.permute.xlu0 %115
    %v119 = vcombine.high %v111, %v111
    %v121 = vsel %vm25, %v109, 0
    %v123 = vsel %vm29, %v111, 0
    %v125 = vsel %vm29, %v119, 0
    %127 = vmatprep.subr.mxu0 0.0
    %128 = vmatpush1.msra.mxu0 0.0
    %129 = vmatprep.subr.mxu0 0.0
    %130 = vmatpush1.msra.mxu0 0.0
    %131 = vmatprep.subr.mxu0 0.0
    %132 = vmatpush1.msra.mxu0 0.0
    %133 = vmatprep.subr.mxu0 0.0
    %134 = vmatpush1.msra.mxu0 0.0
    %135 = vmatprep.subr.mxu0 0.0
    %136 = vmatpush1.msra.mxu0 0.0
    %137 = vmatprep.subr.mxu0 0.0
    %138 = vmatpush1.msra.mxu0 0.0
    %139 = vmatprep.subr.mxu0 0.0
    %140 = vmatpush1.msra.mxu0 0.0
    %141 = vmatprep.subr.mxu0 0.0
    %142 = vmatpush1.msra.mxu0 0.0
    %143 = vmatprep.subr.mxu0 0.0
    %144 = vmatpush1.msra.mxu0 0.0
    %145 = vmatprep.subr.mxu0 0.0
    %146 = vmatpush1.msra.mxu0 0.0
    %147 = vmatprep.subr.mxu0 0.0
    %148 = vmatpush1.msra.mxu0 0.0
    %149 = vmatprep.subr.mxu0 0.0
    %150 = vmatpush1.msra.mxu0 0.0
    %151 = vmatprep.subr.mxu0 0.0
    %152 = vmatpush1.msra.mxu0 0.0
    %153 = vmatprep.subr.mxu0 0.0
    %154 = vmatpush1.msra.mxu0 0.0
    %155 = vmatprep.subr.mxu0 0.0
    %156 = vmatpush1.msra.mxu0 0.0
    %157 = vmatprep.subr.mxu0 %v125
    %158 = vmatpush1.msra.mxu0 %v123
    %159 = vmatprep.subr.mxu0 0.0
    %160 = vmatpush2.msra.mxu0 0.0
    %161 = vmatprep.subr.mxu0 0.0
    %162 = vmatpush2.msra.mxu0 0.0
    %163 = vmatprep.subr.mxu0 0.0
    %164 = vmatpush2.msra.mxu0 0.0
    %165 = vmatprep.subr.mxu0 0.0
    %166 = vmatpush2.msra.mxu0 0.0
    %167 = vmatprep.subr.mxu0 0.0
    %168 = vmatpush2.msra.mxu0 0.0
    %169 = vmatprep.subr.mxu0 0.0
    %170 = vmatpush2.msra.mxu0 0.0
    %171 = vmatprep.subr.mxu0 0.0
    %172 = vmatpush2.msra.mxu0 0.0
    %173 = vmatprep.subr.mxu0 0.0
    %174 = vmatpush2.msra.mxu0 0.0
    %175 = vmatprep.subr.mxu0 0.0
    %176 = vmatpush2.msra.mxu0 0.0
    %177 = vmatprep.subr.mxu0 0.0
    %178 = vmatpush2.msra.mxu0 0.0
    %179 = vmatprep.subr.mxu0 0.0
    %180 = vmatpush2.msra.mxu0 0.0
    %181 = vmatprep.subr.mxu0 0.0
    %182 = vmatpush2.msra.mxu0 0.0
    %183 = vmatprep.subr.mxu0 0.0
    %184 = vmatpush2.msra.mxu0 0.0
    %185 = vmatprep.subr.mxu0 0.0
    %186 = vmatpush2.msra.mxu0 0.0
    %187 = vmatprep.subr.mxu0 0.0
    %188 = vmatpush2.msra.mxu0 0.0
    %189 = vmatprep.subr.mxu0 0.0
    %190 = vmatpush2.msra.mxu0 0.0
    %191 = vmatprep.mubr.f32.mxu0 0.0
    %192 = vmatmul.mubr.f32.gmra.mxu0 %v121
    %v193 = vpop.f32.mrf.mxu0
    %v194 = vadd.f32 %v116, %v193
    %v195 = vpop.f32.mrf.mxu0
    %v196 = vadd.f32 %v116, %v195
    %197 = vdwg.mxu0
    %v198 = vmax.f32 %v194, 0.0
    %v199 = vmax.f32 %v196, 0.0
    %s200 = scalar_lea.vmem [#allocation2], 16
    %201 = vst [vmem:[%s200] sm:$0xff] %v198
    %202 = vst [vmem:[%s200 + $0x8] sm:$0xff] %v199
    // Predicated region
    $region14: #{tpu_custom_call.1} parent=1 // pred_check
      _
    $region15: #{tpu_custom_call.1} parent=1 // pred_check_branch
      %204 = sbr.rel (0) target = $region17
    $region16: #{tpu_custom_call.1} parent=1 // pred_region
      %s206 = ssub.s32 512, 512
      %207 = vsyncadd [#allocation3], %s206
      %s208 = sshll.u32 [#allocation2], 4
      %s209 = int_to_ptr.vmem [resolvable:$true] %s208
      %214 = dma.vmem_to_hbm [thread:$0]  %s209, 512, %s3, [#allocation3], 256, 256, 16
    $region17: #{tpu_custom_call.1} parent=1 // pred_fallthru
      _
    // Predicated region
    $region18: #{tpu_custom_call.1} parent=1 // pred_check
      _
    $region19: #{tpu_custom_call.1} parent=1 // pred_check_branch
      %216 = sbr.rel (0) target = $region21
    $region20: #{tpu_custom_call.1} parent=1 // pred_region
      %217 = dma.done [#allocation3], 512
    $region21: #{tpu_custom_call.1} parent=1 // pred_fallthru
      _
    %218 = vsyncpa [#allocation3], 1

</llo_original>
